<compile_context>
chip_gen: v6e
topology: v6e:2x2x1
jax: 0.10.0
libtpu: 0.0.40
codegen_flags: <defaults>
</compile_context>

<pallas_src>
import jax
import jax.numpy as jnp
from jax import lax
from jax.experimental import pallas as pl
from jax.experimental.pallas import tpu as pltpu


def _round_up(x: int, m: int) -> int:
    return -(-x // m) * m


def _make_mre_kernel(*, rows, tile_m, C, CH, steps, nblocks, acc_rows,
                     need_special, first_special):
    """Build the kernel closure (all tiling params are Python ints)."""
    n_chunks = tile_m // CH

    def _accumulate(x_ref, t_ref, o_ref, valid_rows=None):
        # Walk the (tile_m, C) block in (CH, C) chunks; the running partial is
        # carried through the fori_loop in registers (no big VMEM temporary).
        def body(c, acc):
            r0 = pl.multiple_of(c * CH, CH)
            x = x_ref[pl.ds(r0, CH), :].astype(jnp.float32)
            t = t_ref[pl.ds(r0, CH), :].astype(jnp.float32)
            # Exact divide to match torch semantics (the rcp part rides EUP).
            err = jnp.abs(x / t - 1.0)
            if valid_rows is not None:
                # Row mask for the ragged tail / dead blocks.  Garbage rows in
                # the overhang may produce inf/nan; jnp.where selects 0 there.
                rid = lax.broadcasted_iota(jnp.int32, (CH, C), 0) + r0
                err = jnp.where(rid < valid_rows, err, 0.0)
            return acc + err

        acc = lax.fori_loop(0, n_chunks, body,
                            jnp.zeros((CH, C), jnp.float32))
        if CH != acc_rows:
            # Small tile-aligned fold (CH, C) -> (acc_rows, C), once per step.
            acc = acc.reshape(CH // acc_rows, acc_rows, C).sum(axis=0)
        o_ref[...] += acc

    def kernel(x_ref, t_ref, o_ref):
        i = pl.program_id(1)

        @pl.when(i == 0)
        def _():
            o_ref[...] = jnp.zeros_like(o_ref)

        if not need_special:
            # Every block is completely valid: mask-free hot path.
            _accumulate(x_ref, t_ref, o_ref)
        else:
            b = pl.program_id(0) * steps + i

            @pl.when(b < first_special)
            def _():
                _accumulate(x_ref, t_ref, o_ref)

            @pl.when(b >= first_special)
            def _():
                # Boundary block (partially valid) or dead block (valid <= 0,
                # everything masked -> contributes exactly 0).
                valid = rows - b * tile_m
                _accumulate(x_ref, t_ref, o_ref, valid_rows=valid)

    return kernel


def mre_loss(
    input_arr: jax.Array,
    target_arr: jax.Array,
    *,
    lane_width: int = 512,
    block_bytes: int = 4 * 1024 * 1024,
    num_shards: int = 2,
    core_parallel: bool = False,           # set True on v7x (2 TCs/chip)
    vmem_limit_bytes: int = 32 * 1024 * 1024,
) -> jax.Array:
    """Pallas implementation of MREloss.forward: mean(|input/target - 1|)."""
    assert input_arr.shape == target_arr.shape
    assert lane_width % 128 == 0
    n_total = int(input_arr.size)
    if n_total == 0:
        return jnp.float32(jnp.nan)        # torch mean of empty -> nan

    # Compute dtype: stream native floating dtype, upcast to f32 in-kernel.
    dt = jnp.promote_types(input_arr.dtype, target_arr.dtype)
    if not jnp.issubdtype(dt, jnp.floating):
        dt = jnp.float32
    itemsize = jnp.dtype(dt).itemsize
    sub_min = max(8, 32 // itemsize)       # min sublane granularity per dtype

    x = input_arr.reshape(-1).astype(dt)
    t = target_arr.reshape(-1).astype(dt)

    # Pick the widest lane width that divides n_total -> free (no-copy) reshape.
    C = None
    for cand in (lane_width, 256, 128):
        if cand % 128 == 0 and n_total % cand == 0:
            C = cand
            break
    n_padded = n_total
    if C is None:
        # TODO(synk): a fully copy-free ragged path needs 1-D streaming blocks;
        # fall back to a single pad-with-ones copy for lane-ragged lengths.
        C = lane_width
        n_padded = _round_up(n_total, sub_min * C)
        pad = n_padded - n_total
        x = jnp.pad(x, (0, pad), constant_values=1)    # |1/1 - 1| == 0
        t = jnp.pad(t, (0, pad), constant_values=1)

    rows = n_padded // C
    x2 = x.reshape(rows, C)
    t2 = t.reshape(rows, C)

    # Row-tile size: as large as block_bytes allows (multiple of sub_min).
    if rows < sub_min:
        tile_m = rows                      # full-extent sublane dim (allowed)
    else:
        cap = max(sub_min, (block_bytes // (C * itemsize)) // sub_min * sub_min)
        tile_m = min(cap, _round_up(pl.cdiv(rows, num_shards), sub_min))

    # Rows per in-kernel chunk: ~64 KiB of f32 per operand (~16 vregs).
    if tile_m < sub_min:
        CH = tile_m
    else:
        CH = sub_min
        for cand in (128, 64, 32, 16, 8):
            if (cand % sub_min == 0 and tile_m % cand == 0
                    and cand * C * 4 <= 64 * 1024):
                CH = cand
                break
    acc_rows = 8 if CH % 8 == 0 else CH

    nblocks = pl.cdiv(rows, tile_m)
    steps = pl.cdiv(nblocks, num_shards)
    coverage = steps * num_shards
    ragged_rows = (rows % tile_m) != 0
    need_special = ragged_rows or (coverage > nblocks)
    first_special = nblocks - 1 if ragged_rows else nblocks

    if coverage > nblocks:
        # Clamp so dead grid points re-read the last valid block (they are
        # fully masked in-kernel and contribute 0) -> no OOB DMA ever issued.
        def in_map(p, i):
            return (jnp.minimum(p * steps + i, nblocks - 1), 0)
    else:
        def in_map(p, i):
            return (p * steps + i, 0)

    kernel = _make_mre_kernel(
        rows=rows, tile_m=tile_m, C=C, CH=CH, steps=steps, nblocks=nblocks,
        acc_rows=acc_rows, need_special=need_special,
        first_special=first_special)

    if core_parallel:
        dim_sem = (pltpu.CORE_PARALLEL, pltpu.ARBITRARY)
    else:
        dim_sem = ("parallel", "arbitrary")

    partial = pl.pallas_call(
        kernel,
        out_shape=jax.ShapeDtypeStruct((num_shards, acc_rows, C), jnp.float32),
        grid_spec=pltpu.PrefetchScalarGridSpec(
            num_scalar_prefetch=0,
            grid=(num_shards, steps),
            in_specs=[
                pl.BlockSpec((tile_m, C), in_map),
                pl.BlockSpec((tile_m, C), in_map),
            ],
            # One resident (acc_rows, C) accumulator slot per shard.
            out_specs=pl.BlockSpec((None, acc_rows, C), lambda p, i: (p, 0, 0)),
        ),
        compiler_params=pltpu.CompilerParams(
            dimension_semantics=dim_sem,
            # 2 inputs x 2 pipeline buffers x ~4 MiB = ~16 MiB; keep headroom
            # (also covers v5e's 16 MiB scoped default being too small).
            vmem_limit_bytes=vmem_limit_bytes,
        ),
        cost_estimate=pl.CostEstimate(
            flops=3 * n_total,
            transcendentals=n_total,
            bytes_accessed=2 * n_total * itemsize + num_shards * acc_rows * C * 4,
        ),
    )(x2, t2)

    # Tiny XLA epilogue: single cross-lane reduce + mean over the ORIGINAL
    # element count (padding / masked rows never count).
    return jnp.sum(partial) / jnp.float32(n_total)


if __name__ == "__main__":
    key = jax.random.PRNGKey(0)
    k1, k2, k3, k4, k5, k6 = jax.random.split(key, 6)

    # Test 1: lane-aligned shape -> zero-copy reshape, mask-free hot path.
    inp = jax.random.uniform(k1, (64, 128), jnp.float32, minval=0.1, maxval=1.0)
    tgt = jax.random.uniform(k2, (64, 128), jnp.float32, minval=0.1, maxval=1.0)
    loss = mre_loss(inp, tgt)
    jax.block_until_ready(loss)
    ref = jnp.mean(jnp.abs(inp / tgt - 1.0))
    assert jnp.allclose(loss, ref, rtol=1e-5, atol=1e-6), (loss, ref)

    # Test 2: lane-ragged shape -> small pad-with-ones fallback path.
    inp2 = jax.random.uniform(k3, (3, 5, 7), jnp.float32, minval=0.1, maxval=1.0)
    tgt2 = jax.random.uniform(k4, (3, 5, 7), jnp.float32, minval=0.1, maxval=1.0)
    loss2 = mre_loss(inp2, tgt2)
    jax.block_until_ready(loss2)
    ref2 = jnp.mean(jnp.abs(inp2 / tgt2 - 1.0))
    assert jnp.allclose(loss2, ref2, rtol=1e-5, atol=1e-6), (loss2, ref2)

    # Test 3: lane-aligned but row-ragged -> in-kernel masked boundary block.
    inp3 = jax.random.uniform(k5, (40, 128), jnp.float32, minval=0.1, maxval=1.0)
    tgt3 = jax.random.uniform(k6, (40, 128), jnp.float32, minval=0.1, maxval=1.0)
    loss3 = mre_loss(inp3, tgt3)
    jax.block_until_ready(loss3)
    ref3 = jnp.mean(jnp.abs(inp3 / tgt3 - 1.0))
    assert jnp.allclose(loss3, ref3, rtol=1e-5, atol=1e-6), (loss3, ref3)

    # Test 4: bf16 inputs streamed natively (upcast to f32 inside the kernel).
    inp4 = inp.astype(jnp.bfloat16)
    tgt4 = tgt.astype(jnp.bfloat16)
    loss4 = mre_loss(inp4, tgt4)
    jax.block_until_ready(loss4)
    ref4 = jnp.mean(jnp.abs(inp4.astype(jnp.float32) / tgt4.astype(jnp.float32) - 1.0))
    assert jnp.allclose(loss4, ref4, rtol=1e-4, atol=1e-5), (loss4, ref4)

    print("KERNEL_OK")
</pallas_src>

<mosaic_0001>
module attributes {stable_mosaic.version = 11 : i64} {
  func.func @kernel(%arg0: i32, %arg1: i32, %arg2: memref<8x512xf32, #tpu.memory_space<vmem>>, %arg3: memref<8x512xf32, #tpu.memory_space<vmem>>, %arg4: memref<1x8x512xf32, #tpu.memory_space<vmem>>) attributes {dimension_semantics = [#tpu.dimension_semantics<parallel>, #tpu.dimension_semantics<arbitrary>], iteration_bounds = array<i64: 2, 1>, scalar_prefetch = 0 : i64, scratch_operands = 0 : i64, tpu.core_type = #tpu.core_type<tc>, window_params = [{transform_indices = @transform_0, window_bounds = array<i64: 8, 512>}, {transform_indices = @transform_1, window_bounds = array<i64: 8, 512>}, {transform_indices = @transform_2, window_bounds = array<i64: 1, 8, 512>}]} {
    %c0_i32 = arith.constant 0 : i32
    %0 = arith.cmpi eq, %arg1, %c0_i32 : i32
    %1 = arith.extui %0 : i1 to i32
    %c0_i32_0 = arith.constant 0 : i32
    %2 = arith.cmpi ne, %1, %c0_i32_0 : i32
    scf.if %2 {
      %cst_10 = arith.constant 0.000000e+00 : f32
      %21 = vector.broadcast %cst_10 : f32 to vector<8x512xf32>
      %c0_11 = arith.constant 0 : index
      %c0_12 = arith.constant 0 : index
      %c0_13 = arith.constant 0 : index
      %22 = vector.load %arg4[%c0_11, %c0_12, %c0_13] : memref<1x8x512xf32, #tpu.memory_space<vmem>>, vector<1x8x512xf32>
      %23 = vector.shape_cast %22 : vector<1x8x512xf32> to vector<8x512xf32>
      %24 = vector.shape_cast %21 : vector<8x512xf32> to vector<1x8x512xf32>
      tpu.vector_store %arg4[%c0_11, %c0_12, %c0_13], %24 {strides = array<i32>} : memref<1x8x512xf32, #tpu.memory_space<vmem>>, vector<1x8x512xf32>,
    } else {
    }
    %cst = arith.constant 0.000000e+00 : f32
    %3 = vector.broadcast %cst : f32 to vector<8x512xf32>
    %c0_i32_1 = arith.constant 0 : i32
    %c8_i32 = arith.constant 8 : i32
    %4 = arith.muli %c0_i32_1, %c8_i32 : i32
    %5 = tpu.assume_multiple %4, 8 : i32
    %6 = arith.index_cast %5 : i32 to index
    %c0 = arith.constant 0 : index
    %7 = vector.load %arg2[%6, %c0] : memref<8x512xf32, #tpu.memory_space<vmem>>, vector<8x512xf32>
    %8 = arith.index_cast %5 : i32 to index
    %c0_2 = arith.constant 0 : index
    %9 = vector.load %arg3[%8, %c0_2] : memref<8x512xf32, #tpu.memory_space<vmem>>, vector<8x512xf32>
    %10 = arith.divf %7, %9 : vector<8x512xf32>
    %cst_3 = arith.constant 1.000000e+00 : f32
    %11 = vector.broadcast %cst_3 : f32 to vector<8x512xf32>
    %12 = arith.subf %10, %11 : vector<8x512xf32>
    %13 = math.absf %12 : vector<8x512xf32>
    %14 = arith.addf %3, %13 : vector<8x512xf32>
    %c1_i32 = arith.constant 1 : i32
    %c0_4 = arith.constant 0 : index
    %c0_5 = arith.constant 0 : index
    %c0_6 = arith.constant 0 : index
    %15 = vector.load %arg4[%c0_4, %c0_5, %c0_6] : memref<1x8x512xf32, #tpu.memory_space<vmem>>, vector<1x8x512xf32>
    %16 = vector.shape_cast %15 : vector<1x8x512xf32> to vector<8x512xf32>
    %17 = arith.addf %16, %14 : vector<8x512xf32>
    %c0_7 = arith.constant 0 : index
    %c0_8 = arith.constant 0 : index
    %c0_9 = arith.constant 0 : index
    %18 = vector.load %arg4[%c0_7, %c0_8, %c0_9] : memref<1x8x512xf32, #tpu.memory_space<vmem>>, vector<1x8x512xf32>
    %19 = vector.shape_cast %18 : vector<1x8x512xf32> to vector<8x512xf32>
    %20 = vector.shape_cast %17 : vector<8x512xf32> to vector<1x8x512xf32>
    tpu.vector_store %arg4[%c0_7, %c0_8, %c0_9], %20 {strides = array<i32>} : memref<1x8x512xf32, #tpu.memory_space<vmem>>, vector<1x8x512xf32>,
    return
  }
  func.func @transform_0(%arg0: i32, %arg1: i32) -> (i32, i32) {
    %c1_i32 = arith.constant 1 : i32
    %0 = arith.muli %arg0, %c1_i32 : i32
    %1 = arith.addi %0, %arg1 : i32
    %c0_i32 = arith.constant 0 : i32
    %c0_i32_0 = arith.constant 0 : i32
    return %1, %c0_i32 : i32, i32
  }
  func.func @transform_1(%arg0: i32, %arg1: i32) -> (i32, i32) {
    %c1_i32 = arith.constant 1 : i32
    %0 = arith.muli %arg0, %c1_i32 : i32
    %1 = arith.addi %0, %arg1 : i32
    %c0_i32 = arith.constant 0 : i32
    %c0_i32_0 = arith.constant 0 : i32
    return %1, %c0_i32 : i32, i32
  }
  func.func @transform_2(%arg0: i32, %arg1: i32) -> (i32, i32, i32) {
    %c0_i32 = arith.constant 0 : i32
    %c0_i32_0 = arith.constant 0 : i32
    %c0_i32_1 = arith.constant 0 : i32
    return %arg0, %c0_i32, %c0_i32_0 : i32, i32, i32
  }
}

</mosaic_0001>

<llo_original>
// kernel: tpu_custom_call.1
$region0: #{tpu_custom_call.1}
  #allocation0 [shape = 'u32[]', space=smem, size = 0x4, offset = 0x4, fixed_abs, tag = 'smem constant byte address 0x4 - core index']
  #allocation1 [shape = 'u32[144,128]{1,0:T(1,128)}', space=vmem, size = 0x12000, scoped, tag = 'internal scratch']
  %s0 = inlined_call_operand.hbm [shape: f32[16,512], index: 0, kind: input, shape index: {}]
  %s1 = inlined_call_operand.hbm [shape: f32[16,512], index: 1, kind: input, shape index: {}]
  %s2 = inlined_call_operand.hbm [shape: f32[2,8,512], index: 2, kind: output, shape index: {}]
  %s3 = sld [smem:[#allocation0]]
  $region53: #{tpu_custom_call.1} parent=0
    _
  %s5 = ssub.s32 1, %s3
  %s6 = scalar_select 0, %s5, %s3
  $region1: #{tpu_custom_call.1} parent=0
    #allocation2 [shape = 'u8[32768]{0}', space=vmem, size = 0x8000, scoped, tag = 'input window, operand 0']
    #allocation3 [shape = 's32[2]{0}', space=sflag, size = 0x8, scoped, tag = 'scoped memory for tpu_custom_call.1']
    #allocation4 [shape = 's32[2]{0}', space=sflag, size = 0x8, scoped, tag = 'scoped memory for tpu_custom_call.1']
    #allocation5 [shape = 'u8[32768]{0}', space=vmem, size = 0x8000, scoped, tag = 'input window, operand 1']
    #allocation6 [shape = 's32[2]{0}', space=sflag, size = 0x8, scoped, tag = 'scoped memory for tpu_custom_call.1']
    #allocation7 [shape = 'u8[32768]{0}', space=vmem, size = 0x8000, scoped, tag = 'output window, operand 0']
    %7 = vsyncpa [#allocation3], 0
    %s8 = scalar_lea.sflag [#allocation3], 1
    %9 = vsyncpa %s8, 0
    %10 = vsyncpa [#allocation6], 0
    %s11 = scalar_lea.sflag [#allocation6], 1
    %12 = vsyncpa %s11, 0
    %13 = vsyncpa [#allocation4], 0
    %s14 = scalar_lea.sflag [#allocation4], 1
    %15 = vsyncpa %s14, 0
    loop: start=0, step=1, limit=4
    $region2: #{tpu_custom_call.1} parent=1 // loop_pre_header
      _
    $region3: #{tpu_custom_call.1} parent=1 // loop_header
      %s17 = sphi 0, %s21
      %p18 = scmp.ge.s32.totalorder %s17, 4
      %s24 = sphi 0, %s36
      %s25 = sphi 0, %s32
      %s26 = sphi 0, %s24
      %s27 = sphi 0, %s25
      %s28 = sphi 0, %s26
      %s29 = sphi 0, %s27
      %s41 = sphi 0, %s43
      %s44 = sphi 0, %s41
      %s45 = sphi 0, %s44
      %s61 = sphi 0, %s45
      %s69 = sphi 0, %s71
      %s72 = sphi 0, %s69
      %s73 = sphi 0, %s72
      %s89 = sphi 0, %s73
      %s95 = sphi 0, %s97
      %s98 = sphi 0, %s95
      %s99 = sphi 0, %s98
      %s115 = sphi 0, %s99
    $region4: #{tpu_custom_call.1} parent=1 // loop_header_branch
      %20 = sbr.rel (%p18) target = $region8
    $region5: #{tpu_custom_call.1} parent=1 // loop_body
      %s22 = ssub.s32 %s17, 1
      %s23 = ssub.s32 %s17, 2
      %s30 = sadd.s32 1, %s25
      %p31 = scmp.ge.s32.totalorder %s30, 1
      %s32 = scalar_select %p31, 0, %s30
      %s33 = sadd.s32 1, %s24
      %s34 = scalar_select %p31, %s33, %s24
      %p35 = scmp.ge.s32.totalorder %s34, 2
      %s36 = scalar_select %p35, 0, %s34
      %s37 = sadd.s32 %s24, %s25
      %s38 = sadd.s32 %s36, %s32
      %s39 = ssub.s32 %s37, %s38
      %p40 = scmp.eq.s32.totalorder %s39, 0
      %s42 = sadd.s32 %s41, 1
      %s43 = scalar_select %p40, %s41, %s42
      %p46 = pneg %p40
      %p47 = scmp.eq.s32.totalorder %s17, 1
      %p48 = por %p46, %p47
      %p49 = scmp.ne.s32.totalorder %s41, %s44
      %p50 = scmp.eq.s32.totalorder %s17, 0
      %p51 = por %p49, %p50
      %p52 = scmp.ne.s32.totalorder %s41, %s44
      %p53 = scmp.eq.s32.totalorder %s22, 1
      %p54 = por %p52, %p53
      %p55 = scmp.ne.s32.totalorder %s44, %s45
      %p56 = scmp.eq.s32.totalorder %s22, 0
      %p57 = por %p55, %p56
      %p58 = scmp.ne.s32.totalorder %s44, %s45
      %p59 = scmp.eq.s32.totalorder %s23, 1
      %p60 = por %p58, %p59
      %p62 = scmp.ne.s32.totalorder %s45, %s61
      %p63 = scmp.eq.s32.totalorder %s23, 0
      %p64 = por %p62, %p63
      %s65 = sadd.s32 %s24, %s25
      %s66 = sadd.s32 %s36, %s32
      %s67 = ssub.s32 %s65, %s66
      %p68 = scmp.eq.s32.totalorder %s67, 0
      %s70 = sadd.s32 %s69, 1
      %s71 = scalar_select %p68, %s69, %s70
      %p74 = pneg %p68
      %p75 = scmp.eq.s32.totalorder %s17, 1
      %p76 = por %p74, %p75
      %p77 = scmp.ne.s32.totalorder %s69, %s72
      %p78 = scmp.eq.s32.totalorder %s17, 0
      %p79 = por %p77, %p78
      %p80 = scmp.ne.s32.totalorder %s69, %s72
      %p81 = scmp.eq.s32.totalorder %s22, 1
      %p82 = por %p80, %p81
      %p83 = scmp.ne.s32.totalorder %s72, %s73
      %p84 = scmp.eq.s32.totalorder %s22, 0
      %p85 = por %p83, %p84
      %p86 = scmp.ne.s32.totalorder %s72, %s73
      %p87 = scmp.eq.s32.totalorder %s23, 1
      %p88 = por %p86, %p87
      %p90 = scmp.ne.s32.totalorder %s73, %s89
      %p91 = scmp.eq.s32.totalorder %s23, 0
      %p92 = por %p90, %p91
      %s93 = ssub.s32 %s24, %s36
      %p94 = scmp.eq.s32.totalorder %s93, 0
      %s96 = sadd.s32 %s95, 1
      %s97 = scalar_select %p94, %s95, %s96
      %p100 = pneg %p94
      %p101 = scmp.eq.s32.totalorder %s17, 1
      %p102 = por %p100, %p101
      %p103 = scmp.ne.s32.totalorder %s95, %s98
      %p104 = scmp.eq.s32.totalorder %s17, 0
      %p105 = por %p103, %p104
      %p106 = scmp.ne.s32.totalorder %s95, %s98
      %p107 = scmp.eq.s32.totalorder %s22, 1
      %p108 = por %p106, %p107
      %p109 = scmp.ne.s32.totalorder %s98, %s99
      %p110 = scmp.eq.s32.totalorder %s22, 0
      %p111 = por %p109, %p110
      %p112 = scmp.ne.s32.totalorder %s98, %s99
      %p113 = scmp.eq.s32.totalorder %s23, 1
      %p114 = por %p112, %p113
      %p116 = scmp.ne.s32.totalorder %s99, %s115
      %p117 = scmp.eq.s32.totalorder %s23, 0
      %p118 = por %p116, %p117
      %p119 = scmp.le.s32.totalorder 1, %s17
      %p120 = scmp.lt.s32.totalorder %s17, 3
      %p121 = pnand %p119, %p120
      %p122 = pneg %p121
      // Predicated region
      $region9: #{tpu_custom_call.1} parent=5 // pred_check
        _
      $region10: #{tpu_custom_call.1} parent=5 // pred_check_branch
        %124 = sbr.rel (%p121) target = $region12
      $region11: #{tpu_custom_call.1} parent=5 // pred_region
        %s125 = ssub.s32 %s17, 1
      $region12: #{tpu_custom_call.1} parent=5 // pred_fallthru
        _
      %p126 = scmp.lt.s32.totalorder %s17, 2
      // Predicated region
      $region13: #{tpu_custom_call.1} parent=5 // pred_check
        %p127 = pneg %p126
      $region14: #{tpu_custom_call.1} parent=5 // pred_check_branch
        %129 = sbr.rel (%p127) target = $region16
      $region15: #{tpu_custom_call.1} parent=5 // pred_region
        // Predicated region
        $region17: #{tpu_custom_call.1} parent=15 // pred_check
          %p130 = pneg %p51
        $region18: #{tpu_custom_call.1} parent=15 // pred_check_branch
          %132 = sbr.rel (%p130) target = $region20
        $region19: #{tpu_custom_call.1} parent=15 // pred_region
          %s133 = sand.u32 %s41, 1
          %s134 = scalar_lea.sflag [#allocation3], %s133
          %s135 = sand.u32 %s41, 1
          %s136 = smul.addr %s135, 32
          %s137 = scalar_lea.vmem [#allocation2], %s136
          %s138 = sadd.s32 %s24, %s25
          %s140 = ssub.s32 512, 512
          %141 = vsyncadd %s134, %s140
          %s142 = smul.addr %s138, 4
          %s143 = smul.addr %s142, 128
          %s144 = scalar_lea.hbm %s0, %s143
          %s146 = sshll.u32 %s137, 4
          %s147 = int_to_ptr.vmem [resolvable:$true] %s146
          %149 = dma.hbm_to_vmem [thread:$0]  %s144, 512, %s147, %s134
        $region20: #{tpu_custom_call.1} parent=15 // pred_fallthru
          _
        // Predicated region
        $region21: #{tpu_custom_call.1} parent=15 // pred_check
          %p150 = pneg %p79
        $region22: #{tpu_custom_call.1} parent=15 // pred_check_branch
          %152 = sbr.rel (%p150) target = $region24
        $region23: #{tpu_custom_call.1} parent=15 // pred_region
          %s153 = sand.u32 %s69, 1
          %s154 = scalar_lea.sflag [#allocation6], %s153
          %s155 = sand.u32 %s69, 1
          %s156 = smul.addr %s155, 32
          %s157 = scalar_lea.vmem [#allocation5], %s156
          %s158 = sadd.s32 %s24, %s25
          %s160 = ssub.s32 512, 512
          %161 = vsyncadd %s154, %s160
          %s162 = smul.addr %s158, 4
          %s163 = smul.addr %s162, 128
          %s164 = scalar_lea.hbm %s1, %s163
          %s166 = sshll.u32 %s157, 4
          %s167 = int_to_ptr.vmem [resolvable:$true] %s166
          %169 = dma.hbm_to_vmem [thread:$0]  %s164, 512, %s167, %s154
        $region24: #{tpu_custom_call.1} parent=15 // pred_fallthru
          _
      $region16: #{tpu_custom_call.1} parent=5 // pred_fallthru
        _
      %p170 = scmp.le.s32.totalorder 1, %s17
      %p171 = scmp.lt.s32.totalorder %s17, 3
      %p172 = pnand %p170, %p171
      %p173 = pneg %p172
      // Predicated region
      $region25: #{tpu_custom_call.1} parent=5 // pred_check
        _
      $region26: #{tpu_custom_call.1} parent=5 // pred_check_branch
        %175 = sbr.rel (%p172) target = $region28
      $region27: #{tpu_custom_call.1} parent=5 // pred_region
        %s176 = ssub.s32 %s17, 1
        %s177 = sand.u32 %s44, 1
        %s178 = scalar_lea.sflag [#allocation3], %s177
        %s179 = sand.u32 %s44, 1
        %s180 = smul.addr %s179, 32
        %s181 = scalar_lea.vmem [#allocation2], %s180
        // Predicated region
        $region29: #{tpu_custom_call.1} parent=27 // pred_check
          %p182 = pneg %p57
        $region30: #{tpu_custom_call.1} parent=27 // pred_check_branch
          %184 = sbr.rel (%p182) target = $region32
        $region31: #{tpu_custom_call.1} parent=27 // pred_region
          %185 = dma.done %s178, 512
        $region32: #{tpu_custom_call.1} parent=27 // pred_fallthru
          _
        %s186 = sand.u32 %s72, 1
        %s187 = scalar_lea.sflag [#allocation6], %s186
        %s188 = sand.u32 %s72, 1
        %s189 = smul.addr %s188, 32
        %s190 = scalar_lea.vmem [#allocation5], %s189
        // Predicated region
        $region33: #{tpu_custom_call.1} parent=27 // pred_check
          %p191 = pneg %p85
        $region34: #{tpu_custom_call.1} parent=27 // pred_check_branch
          %193 = sbr.rel (%p191) target = $region36
        $region35: #{tpu_custom_call.1} parent=27 // pred_region
          %194 = dma.done %s187, 512
        $region36: #{tpu_custom_call.1} parent=27 // pred_fallthru
          _
        %s195 = sand.u32 %s44, 1
        %s196 = scalar_lea.sflag [#allocation3], %s195
        %s197 = sand.u32 %s44, 1
        %s198 = smul.addr %s197, 32
        %s199 = scalar_lea.vmem [#allocation2], %s198
        %p200 = pneg %p57
        %p201 = pneg %p54
        %s202 = sand.u32 %s72, 1
        %s203 = scalar_lea.sflag [#allocation6], %s202
        %s204 = sand.u32 %s72, 1
        %s205 = smul.addr %s204, 32
        %s206 = scalar_lea.vmem [#allocation5], %s205
        %p207 = pneg %p85
        %p208 = pneg %p82
        %p209 = pneg %p111
        %p210 = pneg %p108
        %s211 = sand.u32 %s98, 1
        %s212 = scalar_lea.sflag [#allocation4], %s211
        %s213 = sand.u32 %s98, 1
        %s214 = smul.addr %s213, 32
        %s215 = scalar_lea.vmem [#allocation7], %s214
        %s216 = sadd.s32 %s26, %s27
        %s217 = sadd.s32 %s26, %s27
        %p218 = scmp.eq.s32.totalorder %s27, 0
        // Predicated region
        $region37: #{tpu_custom_call.1} parent=27 // pred_check
          %p219 = pneg %p218
        $region38: #{tpu_custom_call.1} parent=27 // pred_check_branch
          %221 = sbr.rel (%p219) target = $region40
        $region39: #{tpu_custom_call.1} parent=27 // pred_region
          %222 = vst [vmem:[%s215] sm:$0xff] 0.0
          %223 = vst [vmem:[%s215 + $0x8] sm:$0xff] 0.0
          %224 = vst [vmem:[%s215 + $0x10] sm:$0xff] 0.0
          %225 = vst [vmem:[%s215 + $0x18] sm:$0xff] 0.0
        $region40: #{tpu_custom_call.1} parent=27 // pred_fallthru
          _
        %s226 = smul.u32 0, 4
        %s227 = smul.addr %s226, 8
        %s228 = scalar_lea.vmem %s181, %s227 [#allocation2]
        %v229 = vld [vmem:[%s228] sm:$0xff]
        %v230 = vld [vmem:[%s228 + $0x8] sm:$0xff]
        %v231 = vld [vmem:[%s228 + $0x10] sm:$0xff]
        %v232 = vld [vmem:[%s228 + $0x18] sm:$0xff]
        %s233 = smul.addr %s226, 8
        %s234 = scalar_lea.vmem %s190, %s233 [#allocation5]
        %v235 = vld [vmem:[%s234] sm:$0xff]
        %v236 = vld [vmem:[%s234 + $0x8] sm:$0xff]
        %v237 = vld [vmem:[%s234 + $0x10] sm:$0xff]
        %v238 = vld [vmem:[%s234 + $0x18] sm:$0xff]
        %v239 = vrcp.pop %v235
        %v240 = vmul.f32 %v229, %v239
        %v241 = vrcp.pop %v236
        %v242 = vmul.f32 %v230, %v241
        %v243 = vrcp.pop %v237
        %v244 = vmul.f32 %v231, %v243
        %v245 = vrcp.pop %v238
        %v246 = vmul.f32 %v232, %v245
        %v247 = vsub.f32 %v240, 1.0
        %v248 = vsub.f32 %v242, 1.0
        %v249 = vsub.f32 %v244, 1.0
        %v250 = vsub.f32 %v246, 1.0
        %v251 = vand.u32 2147483647, %v247
        %v252 = vand.u32 2147483647, %v248
        %v253 = vand.u32 2147483647, %v249
        %v254 = vand.u32 2147483647, %v250
        %v255 = vadd.f32 %v251, 0.0
        %v256 = vadd.f32 %v252, 0.0
        %v257 = vadd.f32 %v253, 0.0
        %v258 = vadd.f32 %v254, 0.0
        %v259 = vld [vmem:[%s215] sm:$0xff]
        %v260 = vld [vmem:[%s215 + $0x8] sm:$0xff]
        %v261 = vld [vmem:[%s215 + $0x10] sm:$0xff]
        %v262 = vld [vmem:[%s215 + $0x18] sm:$0xff]
        %v263 = vadd.f32 %v259, %v255
        %v264 = vadd.f32 %v260, %v256
        %v265 = vadd.f32 %v261, %v257
        %v266 = vadd.f32 %v262, %v258
        %267 = vst [vmem:[%s215] sm:$0xff] %v263
        %268 = vst [vmem:[%s215 + $0x8] sm:$0xff] %v264
        %269 = vst [vmem:[%s215 + $0x10] sm:$0xff] %v265
        %270 = vst [vmem:[%s215 + $0x18] sm:$0xff] %v266
        %s271 = sand.u32 %s98, 1
        %s272 = scalar_lea.sflag [#allocation4], %s271
        %s273 = sand.u32 %s98, 1
        %s274 = smul.addr %s273, 32
        %s275 = scalar_lea.vmem [#allocation7], %s274
        // Predicated region
        $region41: #{tpu_custom_call.1} parent=27 // pred_check
          %p276 = pneg %p108
        $region42: #{tpu_custom_call.1} parent=27 // pred_check_branch
          %278 = sbr.rel (%p276) target = $region44
        $region43: #{tpu_custom_call.1} parent=27 // pred_region
          %s280 = ssub.s32 512, 512
          %281 = vsyncadd %s272, %s280
          %s282 = smul.addr %s26, 4
          %s283 = smul.addr %s282, 128
          %s284 = scalar_lea.hbm %s2, %s283
          %s286 = sshll.u32 %s275, 4
          %s287 = int_to_ptr.vmem [resolvable:$true] %s286
          %289 = dma.vmem_to_hbm [thread:$0]  %s287, 512, %s284, %s272
        $region44: #{tpu_custom_call.1} parent=27 // pred_fallthru
          _
      $region28: #{tpu_custom_call.1} parent=5 // pred_fallthru
        _
      %p290 = scmp.le.s32.totalorder 2, %s17
      // Predicated region
      $region45: #{tpu_custom_call.1} parent=5 // pred_check
        %p291 = pneg %p290
      $region46: #{tpu_custom_call.1} parent=5 // pred_check_branch
        %293 = sbr.rel (%p291) target = $region48
      $region47: #{tpu_custom_call.1} parent=5 // pred_region
        %s294 = ssub.s32 %s17, 2
        // Predicated region
        $region49: #{tpu_custom_call.1} parent=47 // pred_check
          %p295 = pneg %p114
        $region50: #{tpu_custom_call.1} parent=47 // pred_check_branch
          %297 = sbr.rel (%p295) target = $region52
        $region51: #{tpu_custom_call.1} parent=47 // pred_region
          %s298 = sand.u32 %s99, 1
          %s299 = scalar_lea.sflag [#allocation4], %s298
          %s300 = sand.u32 %s99, 1
          %s301 = smul.addr %s300, 32
          %s302 = scalar_lea.vmem [#allocation7], %s301
          %303 = dma.done %s299, 512
        $region52: #{tpu_custom_call.1} parent=47 // pred_fallthru
          _
      $region48: #{tpu_custom_call.1} parent=5 // pred_fallthru
        _
    $region6: #{tpu_custom_call.1} parent=1 // loop_footer
      %s21 = sadd.s32 1, %s17
    $region7: #{tpu_custom_call.1} parent=1 // loop_footer_branch
      %16 = sbr.rel target = $region3
    $region8: #{tpu_custom_call.1} parent=1 // loop_exit
      _
    %304 = vsyncpa [#allocation3], 1
    %s305 = scalar_lea.sflag [#allocation3], 1
    %306 = vsyncpa %s305, 1
    %307 = vsyncpa [#allocation6], 1
    %s308 = scalar_lea.sflag [#allocation6], 1
    %309 = vsyncpa %s308, 1
    %310 = vsyncpa [#allocation4], 1
    %s311 = scalar_lea.sflag [#allocation4], 1
    %312 = vsyncpa %s311, 1

</llo_original>
